<compile_context>
chip_gen: v5e
topology: v5e:2x2
jax: 0.10.0
libtpu: 0.0.40
codegen_flags: <defaults>
</compile_context>

<pallas_src>
import functools

import jax
import jax.numpy as jnp
from jax.experimental import pallas as pl
from jax.experimental.pallas import tpu as pltpu


def _mlp_kernel(x_ref, w1_ref, b1_ref, w2_ref, b2_ref, o_ref):
    # Linear(in_features -> hidden) on the MXU, f32 accumulation.
    h = jnp.dot(x_ref[...], w1_ref[...], preferred_element_type=jnp.float32)
    # Bias + ReLU on the VPU in f32 (b1 is (1, hidden), broadcasts over the batch tile).
    h = jnp.maximum(h + b1_ref[...], 0.0)
    # Linear(hidden -> out_features) on the MXU, f32 accumulation.
    y = jnp.dot(h, w2_ref[...], preferred_element_type=jnp.float32)
    o_ref[...] = (y + b2_ref[...]).astype(o_ref.dtype)


def my_sequential_forward(x, w1, b1, w2, b2, *, tb=512):
    """Fused Linear -> ReLU -> Linear, batch-tiled grid, no wrapper-side pad/slice."""
    batch, in_features = x.shape
    hidden = w1.shape[1]
    out_features = w2.shape[1]

    # Batch tile: if the whole batch fits in one tile use the exact batch (full-dim
    # block, always legal); otherwise tb (default 512, multiple of 8 for f32 sublanes).
    tb = min(tb, batch)
    grid = (pl.cdiv(batch, tb),)

    b1 = b1.reshape(1, hidden)
    b2 = b2.reshape(1, out_features)

    # Advisory cost estimate with the *true* sizes (no padding).
    flops = 2 * batch * in_features * hidden + 2 * batch * hidden * out_features
    bytes_accessed = (x.size * x.dtype.itemsize
                      + w1.size * w1.dtype.itemsize
                      + b1.size * b1.dtype.itemsize
                      + w2.size * w2.dtype.itemsize
                      + b2.size * b2.dtype.itemsize
                      + batch * out_features * x.dtype.itemsize)

    return pl.pallas_call(
        _mlp_kernel,
        out_shape=jax.ShapeDtypeStruct((batch, out_features), x.dtype),
        grid=grid,
        in_specs=[
            pl.BlockSpec((tb, in_features), lambda i: (i, 0)),        # x: tiled on batch
            pl.BlockSpec((in_features, hidden), lambda i: (0, 0)),    # w1: VMEM-resident
            pl.BlockSpec((1, hidden), lambda i: (0, 0)),              # b1: VMEM-resident
            pl.BlockSpec((hidden, out_features), lambda i: (0, 0)),   # w2: VMEM-resident
            pl.BlockSpec((1, out_features), lambda i: (0, 0)),        # b2: VMEM-resident
        ],
        out_specs=pl.BlockSpec((tb, out_features), lambda i: (i, 0)),
        compiler_params=pltpu.CompilerParams(
            dimension_semantics=("parallel",)),
        cost_estimate=pl.CostEstimate(flops=flops, transcendentals=0,
                                      bytes_accessed=bytes_accessed),
    )(x, w1, b1, w2, b2)


def init_params(key, in_features=20, hidden=256, out_features=10, dtype=jnp.float32):
    """Deterministic init mimicking nn.Linear's default U(-1/sqrt(fan_in), 1/sqrt(fan_in))."""
    k1, k2, k3, k4 = jax.random.split(key, 4)
    bound1 = 1.0 / jnp.sqrt(in_features)
    bound2 = 1.0 / jnp.sqrt(hidden)
    w1 = jax.random.uniform(k1, (in_features, hidden), dtype, -bound1, bound1)
    b1 = jax.random.uniform(k2, (1, hidden), dtype, -bound1, bound1)
    w2 = jax.random.uniform(k3, (hidden, out_features), dtype, -bound2, bound2)
    b2 = jax.random.uniform(k4, (1, out_features), dtype, -bound2, bound2)
    return w1, b1, w2, b2


def reference_forward(x, w1, b1, w2, b2):
    h = jnp.maximum(x @ w1 + b1, 0.0)
    return h @ w2 + b2


if __name__ == "__main__":
    key = jax.random.PRNGKey(0)
    kx, kp = jax.random.split(key)

    # TODO(synk): at batch≈2 this MLP is launch-overhead-bound; in a real model fold it
    # into the surrounding XLA graph or batch requests (the kernel scales with batch).
    batch, in_features, hidden, out_features = 2, 20, 256, 10
    x = jax.random.uniform(kx, (batch, in_features), jnp.float32)
    w1, b1, w2, b2 = init_params(kp, in_features, hidden, out_features)

    fwd = jax.jit(functools.partial(my_sequential_forward, tb=512))
    out = jax.block_until_ready(fwd(x, w1, b1, w2, b2))

    ref = reference_forward(x, w1, b1, w2, b2)
    assert out.shape == (batch, out_features)
    # MXU may internally use bf16 passes for f32 operands at default precision.
    assert jnp.allclose(out, ref, atol=2e-2, rtol=2e-2), (
        f"max abs err {jnp.max(jnp.abs(out - ref))}")

    # Second check: multi-step grid with a ragged last batch tile (no padding/slicing).
    batch2 = 300
    x2 = jax.random.uniform(jax.random.PRNGKey(1), (batch2, in_features), jnp.float32)
    fwd2 = jax.jit(functools.partial(my_sequential_forward, tb=128))
    out2 = jax.block_until_ready(fwd2(x2, w1, b1, w2, b2))
    ref2 = reference_forward(x2, w1, b1, w2, b2)
    assert out2.shape == (batch2, out_features)
    assert jnp.allclose(out2, ref2, atol=2e-2, rtol=2e-2), (
        f"max abs err {jnp.max(jnp.abs(out2 - ref2))}")

    print("KERNEL_OK")
</pallas_src>

<mosaic_0001>
module attributes {stable_mosaic.version = 11 : i64} {
  func.func @_mlp_kernel(%arg0: i32, %arg1: memref<2x20xf32, #tpu.memory_space<vmem>>, %arg2: memref<20x256xf32, #tpu.memory_space<vmem>>, %arg3: memref<1x256xf32, #tpu.memory_space<vmem>>, %arg4: memref<256x10xf32, #tpu.memory_space<vmem>>, %arg5: memref<1x10xf32, #tpu.memory_space<vmem>>, %arg6: memref<2x10xf32, #tpu.memory_space<vmem>>) attributes {dimension_semantics = [#tpu.dimension_semantics<parallel>], iteration_bounds = array<i64: 1>, scalar_prefetch = 0 : i64, scratch_operands = 0 : i64, tpu.core_type = #tpu.core_type<tc>, window_params = [{transform_indices = @transform_0, window_bounds = array<i64: 2, 20>}, {pipeline_mode = #tpu.pipeline_mode<synchronous>, transform_indices = @transform_1, window_bounds = array<i64: 20, 256>}, {pipeline_mode = #tpu.pipeline_mode<synchronous>, transform_indices = @transform_2, window_bounds = array<i64: 1, 256>}, {pipeline_mode = #tpu.pipeline_mode<synchronous>, transform_indices = @transform_3, window_bounds = array<i64: 256, 10>}, {pipeline_mode = #tpu.pipeline_mode<synchronous>, transform_indices = @transform_4, window_bounds = array<i64: 1, 10>}, {transform_indices = @transform_5, window_bounds = array<i64: 2, 10>}]} {
    %c0 = arith.constant 0 : index
    %c0_0 = arith.constant 0 : index
    %0 = vector.load %arg1[%c0, %c0_0] : memref<2x20xf32, #tpu.memory_space<vmem>>, vector<2x20xf32>
    %c0_1 = arith.constant 0 : index
    %c0_2 = arith.constant 0 : index
    %1 = vector.load %arg2[%c0_1, %c0_2] : memref<20x256xf32, #tpu.memory_space<vmem>>, vector<20x256xf32>
    %cst = arith.constant dense<0.000000e+00> : vector<2x256xf32>
    %2 = tpu.matmul %0, %1, %cst {dimension_numbers = #tpu.dot_dimension_numbers<[1], [0], [0], [1], [0, 0, 1, 1], [], []>} : vector<2x20xf32>, vector<20x256xf32>, vector<2x256xf32> -> vector<2x256xf32>
    %c0_3 = arith.constant 0 : index
    %c0_4 = arith.constant 0 : index
    %3 = vector.load %arg3[%c0_3, %c0_4] : memref<1x256xf32, #tpu.memory_space<vmem>>, vector<1x256xf32>
    %4 = vector.broadcast %3 : vector<1x256xf32> to vector<2x256xf32>
    %5 = arith.addf %2, %4 : vector<2x256xf32>
    %cst_5 = arith.constant 0.000000e+00 : f32
    %6 = vector.broadcast %cst_5 : f32 to vector<2x256xf32>
    %7 = arith.maximumf %5, %6 : vector<2x256xf32>
    %c0_6 = arith.constant 0 : index
    %c0_7 = arith.constant 0 : index
    %8 = vector.load %arg4[%c0_6, %c0_7] : memref<256x10xf32, #tpu.memory_space<vmem>>, vector<256x10xf32>
    %cst_8 = arith.constant dense<0.000000e+00> : vector<2x10xf32>
    %9 = tpu.matmul %7, %8, %cst_8 {dimension_numbers = #tpu.dot_dimension_numbers<[1], [0], [0], [1], [0, 0, 1, 1], [], []>} : vector<2x256xf32>, vector<256x10xf32>, vector<2x10xf32> -> vector<2x10xf32>
    %c0_9 = arith.constant 0 : index
    %c0_10 = arith.constant 0 : index
    %10 = vector.load %arg5[%c0_9, %c0_10] : memref<1x10xf32, #tpu.memory_space<vmem>>, vector<1x10xf32>
    %11 = vector.broadcast %10 : vector<1x10xf32> to vector<2x10xf32>
    %12 = arith.addf %9, %11 : vector<2x10xf32>
    %c0_11 = arith.constant 0 : index
    %c0_12 = arith.constant 0 : index
    %13 = vector.load %arg6[%c0_11, %c0_12] : memref<2x10xf32, #tpu.memory_space<vmem>>, vector<2x10xf32>
    tpu.vector_store %arg6[%c0_11, %c0_12], %12 {strides = array<i32>} : memref<2x10xf32, #tpu.memory_space<vmem>>, vector<2x10xf32>,
    return
  }
  func.func @transform_0(%arg0: i32) -> (i32, i32) {
    %c0_i32 = arith.constant 0 : i32
    %c0_i32_0 = arith.constant 0 : i32
    return %arg0, %c0_i32 : i32, i32
  }
  func.func @transform_1(%arg0: i32) -> (i32, i32) {
    %c0_i32 = arith.constant 0 : i32
    %c0_i32_0 = arith.constant 0 : i32
    %c0_i32_1 = arith.constant 0 : i32
    return %c0_i32, %c0_i32_0 : i32, i32
  }
  func.func @transform_2(%arg0: i32) -> (i32, i32) {
    %c0_i32 = arith.constant 0 : i32
    %c0_i32_0 = arith.constant 0 : i32
    %c0_i32_1 = arith.constant 0 : i32
    return %c0_i32, %c0_i32_0 : i32, i32
  }
  func.func @transform_3(%arg0: i32) -> (i32, i32) {
    %c0_i32 = arith.constant 0 : i32
    %c0_i32_0 = arith.constant 0 : i32
    %c0_i32_1 = arith.constant 0 : i32
    return %c0_i32, %c0_i32_0 : i32, i32
  }
  func.func @transform_4(%arg0: i32) -> (i32, i32) {
    %c0_i32 = arith.constant 0 : i32
    %c0_i32_0 = arith.constant 0 : i32
    %c0_i32_1 = arith.constant 0 : i32
    return %c0_i32, %c0_i32_0 : i32, i32
  }
  func.func @transform_5(%arg0: i32) -> (i32, i32) {
    %c0_i32 = arith.constant 0 : i32
    %c0_i32_0 = arith.constant 0 : i32
    return %arg0, %c0_i32 : i32, i32
  }
}

</mosaic_0001>

<llo_original>
// kernel: my_sequential_forward.1
$region0: #{my_sequential_forward.1}
  #allocation0 [shape = 'u32[]', space=smem, size = 0x4, offset = 0x4, fixed_abs, tag = 'smem constant byte address 0x4 - core index']
  #allocation1 [shape = 'u32[72,128]{1,0:T(1,128)}', space=vmem, size = 0x9000, scoped, tag = 'internal scratch']
  %s0 = inlined_call_operand.vmem [shape: f32[2,20], index: 0, kind: input, shape index: {}]
  %s1 = inlined_call_operand.vmem [shape: f32[20,256], index: 1, kind: input, shape index: {}]
  %s2 = inlined_call_operand.vmem [shape: f32[1,256], index: 2, kind: input, shape index: {}]
  %s3 = inlined_call_operand.vmem [shape: f32[256,10], index: 3, kind: input, shape index: {}]
  %s4 = inlined_call_operand.vmem [shape: f32[1,10], index: 4, kind: input, shape index: {}]
  %s5 = inlined_call_operand.hbm [shape: f32[2,10], index: 5, kind: output, shape index: {}]
  %s6 = sld [smem:[#allocation0]]
  $region30: #{my_sequential_forward.1} parent=0
    _
  %s8 = ssub.s32 1, %s6
  %s9 = scalar_select 0, %s8, %s6
  $region1: #{my_sequential_forward.1} parent=0
    #allocation2 [shape = 'u8[1024]{0}', space=vmem, size = 0x400, scoped, tag = 'output window, operand 0, single buffered']
    #allocation3 [shape = 's32[1]{0}', space=sflag, size = 0x4, scoped, tag = 'scoped memory for my_sequential_forward.1']
    %10 = vsyncpa [#allocation3], 0
    // Predicated region
    $region2: #{my_sequential_forward.1} parent=1 // pred_check
      _
    $region3: #{my_sequential_forward.1} parent=1 // pred_check_branch
      %12 = sbr.rel (0) target = $region5
    $region4: #{my_sequential_forward.1} parent=1 // pred_region
      _
    $region5: #{my_sequential_forward.1} parent=1 // pred_fallthru
      _
    // Predicated region
    $region6: #{my_sequential_forward.1} parent=1 // pred_check
      _
    $region7: #{my_sequential_forward.1} parent=1 // pred_check_branch
      %14 = sbr.rel (0) target = $region9
    $region8: #{my_sequential_forward.1} parent=1 // pred_region
      _
    $region9: #{my_sequential_forward.1} parent=1 // pred_fallthru
      _
    // Predicated region
    $region10: #{my_sequential_forward.1} parent=1 // pred_check
      _
    $region11: #{my_sequential_forward.1} parent=1 // pred_check_branch
      %16 = sbr.rel (0) target = $region13
    $region12: #{my_sequential_forward.1} parent=1 // pred_region
      _
    $region13: #{my_sequential_forward.1} parent=1 // pred_fallthru
      _
    // Predicated region
    $region14: #{my_sequential_forward.1} parent=1 // pred_check
      _
    $region15: #{my_sequential_forward.1} parent=1 // pred_check_branch
      %18 = sbr.rel (0) target = $region17
    $region16: #{my_sequential_forward.1} parent=1 // pred_region
      _
    $region17: #{my_sequential_forward.1} parent=1 // pred_fallthru
      _
    // Predicated region
    $region18: #{my_sequential_forward.1} parent=1 // pred_check
      _
    $region19: #{my_sequential_forward.1} parent=1 // pred_check_branch
      %20 = sbr.rel (0) target = $region21
    $region20: #{my_sequential_forward.1} parent=1 // pred_region
      _
    $region21: #{my_sequential_forward.1} parent=1 // pred_fallthru
      _
    %v21 = vld [vmem:[%s0] sm:$0x3]
    %v22 = vld [vmem:[%s1] sm:$0xff]
    %v23 = vld [vmem:[%s1 + $0x8] sm:$0xff]
    %v24 = vld [vmem:[%s1 + $0x10] sm:$0xff]
    %v25 = vld [vmem:[%s1 + $0x18] sm:$0xff]
    %v26 = vld [vmem:[%s1 + $0x20] sm:$0xf]
    %v27 = vld [vmem:[%s1 + $0x28] sm:$0xf]
    %v28 = vld [vmem:[%s2] sm:$0x3]
    %v30 = vperm.slane %v28, 0
    %v31 = vperm.slane %v28, 1
    %vm34 = vcmask 162816
    %v36 = vsel %vm34, %v21, 0
    %vm38 = vcmask 1043456
    %v40 = vsel %vm38, %v26, 0
    %v43 = vsel %vm38, %v27, 0
    %45 = vmatpush.msra.mxu0 0.0
    %46 = vmatpush.msra.mxu0 0.0
    %47 = vmatpush.msra.mxu0 0.0
    %48 = vmatpush.msra.mxu0 0.0
    %49 = vmatpush.msra.mxu0 0.0
    %50 = vmatpush.msra.mxu0 0.0
    %51 = vmatpush.msra.mxu0 0.0
    %52 = vmatpush.msra.mxu0 0.0
    %53 = vmatpush.msra.mxu0 0.0
    %54 = vmatpush.msra.mxu0 0.0
    %55 = vmatpush.msra.mxu0 0.0
    %56 = vmatpush.msra.mxu0 0.0
    %57 = vmatpush.msra.mxu0 0.0
    %58 = vmatpush.msra.mxu0 %v40
    %59 = vmatpush.msra.mxu0 %v24
    %60 = vmatpush.msra.mxu0 %v22
    %61 = vmatmul.f32.gmra.mxu0 %v36
    %v62 = vpop.f32.mrf.mxu0
    %v63 = vadd.f32 %v30, %v62
    %64 = vdwg.mxu0
    %65 = vmatpush.msra.mxu0 0.0
    %66 = vmatpush.msra.mxu0 0.0
    %67 = vmatpush.msra.mxu0 0.0
    %68 = vmatpush.msra.mxu0 0.0
    %69 = vmatpush.msra.mxu0 0.0
    %70 = vmatpush.msra.mxu0 0.0
    %71 = vmatpush.msra.mxu0 0.0
    %72 = vmatpush.msra.mxu0 0.0
    %73 = vmatpush.msra.mxu0 0.0
    %74 = vmatpush.msra.mxu0 0.0
    %75 = vmatpush.msra.mxu0 0.0
    %76 = vmatpush.msra.mxu0 0.0
    %77 = vmatpush.msra.mxu0 0.0
    %78 = vmatpush.msra.mxu0 %v43
    %79 = vmatpush.msra.mxu0 %v25
    %80 = vmatpush.msra.mxu0 %v23
    %81 = vmatmul.f32.gmra.mxu0 %v36
    %v82 = vpop.f32.mrf.mxu0
    %v83 = vadd.f32 %v31, %v82
    %84 = vdwg.mxu0
    %v85 = vmax.f32 %v63, 0.0
    %v86 = vmax.f32 %v83, 0.0
    %v87 = vld [vmem:[%s3] sm:$0xff]
    %v88 = vld [vmem:[%s3 + $0x8] sm:$0xff]
    %v89 = vld [vmem:[%s3 + $0x10] sm:$0xff]
    %v90 = vld [vmem:[%s3 + $0x18] sm:$0xff]
    %v91 = vld [vmem:[%s3 + $0x20] sm:$0xff]
    %v92 = vld [vmem:[%s3 + $0x28] sm:$0xff]
    %v93 = vld [vmem:[%s3 + $0x30] sm:$0xff]
    %v94 = vld [vmem:[%s3 + $0x38] sm:$0xff]
    %v95 = vld [vmem:[%s3 + $0x40] sm:$0xff]
    %v96 = vld [vmem:[%s3 + $0x48] sm:$0xff]
    %v97 = vld [vmem:[%s3 + $0x50] sm:$0xff]
    %v98 = vld [vmem:[%s3 + $0x58] sm:$0xff]
    %v99 = vld [vmem:[%s3 + $0x60] sm:$0xff]
    %v100 = vld [vmem:[%s3 + $0x68] sm:$0xff]
    %v101 = vld [vmem:[%s3 + $0x70] sm:$0xff]
    %v102 = vld [vmem:[%s3 + $0x78] sm:$0xff]
    %v103 = vld [vmem:[%s3 + $0x80] sm:$0xff]
    %v104 = vld [vmem:[%s3 + $0x88] sm:$0xff]
    %v105 = vld [vmem:[%s3 + $0x90] sm:$0xff]
    %v106 = vld [vmem:[%s3 + $0x98] sm:$0xff]
    %v107 = vld [vmem:[%s3 + $0xa0] sm:$0xff]
    %v108 = vld [vmem:[%s3 + $0xa8] sm:$0xff]
    %v109 = vld [vmem:[%s3 + $0xb0] sm:$0xff]
    %v110 = vld [vmem:[%s3 + $0xb8] sm:$0xff]
    %v111 = vld [vmem:[%s3 + $0xc0] sm:$0xff]
    %v112 = vld [vmem:[%s3 + $0xc8] sm:$0xff]
    %v113 = vld [vmem:[%s3 + $0xd0] sm:$0xff]
    %v114 = vld [vmem:[%s3 + $0xd8] sm:$0xff]
    %v115 = vld [vmem:[%s3 + $0xe0] sm:$0xff]
    %v116 = vld [vmem:[%s3 + $0xe8] sm:$0xff]
    %v117 = vld [vmem:[%s3 + $0xf0] sm:$0xff]
    %v118 = vld [vmem:[%s3 + $0xf8] sm:$0xff]
    %v119 = vld [vmem:[%s4] sm:$0x1]
    %v121 = vperm.slane %v119, 0
    %123 = vmatpush.msra.mxu0 %v102
    %124 = vmatpush.msra.mxu0 %v101
    %125 = vmatpush.msra.mxu0 %v100
    %126 = vmatpush.msra.mxu0 %v99
    %127 = vmatpush.msra.mxu0 %v98
    %128 = vmatpush.msra.mxu0 %v97
    %129 = vmatpush.msra.mxu0 %v96
    %130 = vmatpush.msra.mxu0 %v95
    %131 = vmatpush.msra.mxu0 %v94
    %132 = vmatpush.msra.mxu0 %v93
    %133 = vmatpush.msra.mxu0 %v92
    %134 = vmatpush.msra.mxu0 %v91
    %135 = vmatpush.msra.mxu0 %v90
    %136 = vmatpush.msra.mxu0 %v89
    %137 = vmatpush.msra.mxu0 %v88
    %138 = vmatpush.msra.mxu0 %v87
    %139 = vmatmul.f32.gmra.mxu0 %v85
    %v140 = vpop.f32.mrf.mxu0
    %v141 = vadd.f32 %v121, %v140
    %142 = vdwg.mxu0
    %143 = vmatpush.msra.mxu0 %v118
    %144 = vmatpush.msra.mxu0 %v117
    %145 = vmatpush.msra.mxu0 %v116
    %146 = vmatpush.msra.mxu0 %v115
    %147 = vmatpush.msra.mxu0 %v114
    %148 = vmatpush.msra.mxu0 %v113
    %149 = vmatpush.msra.mxu0 %v112
    %150 = vmatpush.msra.mxu0 %v111
    %151 = vmatpush.msra.mxu0 %v110
    %152 = vmatpush.msra.mxu0 %v109
    %153 = vmatpush.msra.mxu0 %v108
    %154 = vmatpush.msra.mxu0 %v107
    %155 = vmatpush.msra.mxu0 %v106
    %156 = vmatpush.msra.mxu0 %v105
    %157 = vmatpush.msra.mxu0 %v104
    %158 = vmatpush.msra.mxu0 %v103
    %159 = vmatmul.f32.gmra.mxu0 %v86
    %v160 = vpop.f32.mrf.mxu0
    %v161 = vadd.f32 %v141, %v160
    %162 = vdwg.mxu0
    %vm163 = vcmask 74752
    %164 = vst.msk [vmem:[#allocation2] sm:$0x3] %vm163, %v161
    // Predicated region
    $region22: #{my_sequential_forward.1} parent=1 // pred_check
      _
    $region23: #{my_sequential_forward.1} parent=1 // pred_check_branch
      %166 = sbr.rel (0) target = $region25
    $region24: #{my_sequential_forward.1} parent=1 // pred_region
      %168 = vsyncadd [#allocation3], 0
      %s170 = sshll.u32 [#allocation2], 4
      %s171 = int_to_ptr.vmem [resolvable:$true] %s170
      %s172 = sshll.u32 %s5, 4
      %s173 = int_to_ptr.hbm [resolvable:$true] %s172
      %175 = dma.vmem_to_hbm [thread:$0]  %s171, 32, %s173, [#allocation3]
    $region25: #{my_sequential_forward.1} parent=1 // pred_fallthru
      _
    // Predicated region
    $region26: #{my_sequential_forward.1} parent=1 // pred_check
      _
    $region27: #{my_sequential_forward.1} parent=1 // pred_check_branch
      %177 = sbr.rel (0) target = $region29
    $region28: #{my_sequential_forward.1} parent=1 // pred_region
      %179 = dma.done [#allocation3], 32
    $region29: #{my_sequential_forward.1} parent=1 // pred_fallthru
      _
    %180 = vsyncpa [#allocation3], 1

</llo_original>
